<compile_context>
chip_gen: v5e
topology: v5e:2x2
jax: 0.10.0
libtpu: 0.0.40
codegen_flags: <defaults>
</compile_context>

<pallas_src>
import jax
import jax.numpy as jnp
from jax import lax
from jax.experimental import pallas as pl
from jax.experimental.pallas import tpu as pltpu


# ---------------------------------------------------------------------------
# Generation-aware VMEM budget / tile defaults
# ---------------------------------------------------------------------------
def _vmem_capacity_bytes():
    try:
        return int(pltpu.get_tpu_info().vmem_capacity_bytes)
    except Exception:  # query unavailable -> conservative (v7x per-TC) default
        return 64 * 1024 * 1024


_VMEM_CAP = _vmem_capacity_bytes()
_SMALL_VMEM = _VMEM_CAP <= 64 * 1024 * 1024              # v7x-class (64 MiB per TC)
VMEM_LIMIT_BYTES = min(int(_VMEM_CAP * 0.75), 100 * 1024 * 1024)
DEFAULT_Q_TILE = 128 if _SMALL_VMEM else 256             # attention query tile
DEFAULT_SEQ_TILE = 512 if _SMALL_VMEM else 1024          # projection sequence tile


# ---------------------------------------------------------------------------
# Fused QKV projection: one (Cin, 3E) matmul, three contiguous bf16 outputs
# ---------------------------------------------------------------------------
def _qkv_kernel(x_ref, w_ref, b_ref, q_ref, k_ref, v_ref):
    # x_ref: (1,Tm,Cin)  w_ref: (Cin,3E) bf16 (VMEM-resident)  b_ref: (1,3E) f32
    x = x_ref[0].astype(jnp.bfloat16)
    y = jnp.dot(x, w_ref[...], preferred_element_type=jnp.float32)  # MXU, f32 acc
    y = y + b_ref[...]
    E = q_ref.shape[-1]
    q_ref[0] = y[:, :E].astype(q_ref.dtype)
    k_ref[0] = y[:, E:2 * E].astype(k_ref.dtype)
    v_ref[0] = y[:, 2 * E:].astype(v_ref.dtype)


def qkv_projection(x, w_qkv, b_qkv, embed_dim, *, seq_tile=None):
    B, S, Cin = x.shape
    E = embed_dim
    Tm = min(S, seq_tile or DEFAULT_SEQ_TILE)
    out_sds = jax.ShapeDtypeStruct((B, S, E), jnp.bfloat16)
    out_spec = pl.BlockSpec((1, Tm, E), lambda bi, t: (bi, t, 0))
    return pl.pallas_call(
        _qkv_kernel,
        out_shape=(out_sds, out_sds, out_sds),
        grid=(B, pl.cdiv(S, Tm)),
        in_specs=[
            pl.BlockSpec((1, Tm, Cin), lambda bi, t: (bi, t, 0)),
            pl.BlockSpec((Cin, 3 * E), lambda bi, t: (0, 0)),   # weights stay VMEM-resident
            pl.BlockSpec((1, 3 * E), lambda bi, t: (0, 0)),
        ],
        out_specs=(out_spec, out_spec, out_spec),
        compiler_params=pltpu.CompilerParams(
            dimension_semantics=("parallel", "parallel"),
            vmem_limit_bytes=VMEM_LIMIT_BYTES,
        ),
    )(x, w_qkv, b_qkv)


# ---------------------------------------------------------------------------
# Generic linear (used for out_proj): bf16 MXU inputs, f32 accumulate
# ---------------------------------------------------------------------------
def _linear_kernel(x_ref, w_ref, b_ref, o_ref):
    x = x_ref[0].astype(jnp.bfloat16)           # no-op if already bf16
    y = jnp.dot(x, w_ref[...], preferred_element_type=jnp.float32) + b_ref[...]
    o_ref[0] = y.astype(o_ref.dtype)


def linear(x, w_bf16, b_f32_2d, *, out_dtype=jnp.float32, seq_tile=None):
    B, S, Cin = x.shape
    Cout = w_bf16.shape[1]
    Tm = min(S, seq_tile or DEFAULT_SEQ_TILE)
    return pl.pallas_call(
        _linear_kernel,
        out_shape=jax.ShapeDtypeStruct((B, S, Cout), out_dtype),
        grid=(B, pl.cdiv(S, Tm)),
        in_specs=[
            pl.BlockSpec((1, Tm, Cin), lambda bi, t: (bi, t, 0)),
            pl.BlockSpec((Cin, Cout), lambda bi, t: (0, 0)),
            pl.BlockSpec((1, Cout), lambda bi, t: (0, 0)),
        ],
        out_specs=pl.BlockSpec((1, Tm, Cout), lambda bi, t: (bi, t, 0)),
        compiler_params=pltpu.CompilerParams(
            dimension_semantics=("parallel", "parallel"),
            vmem_limit_bytes=VMEM_LIMIT_BYTES,
        ),
    )(x, w_bf16, b_f32_2d)


# ---------------------------------------------------------------------------
# Attention kernel: all heads per grid step, grid = (batch, query-tile)
# ---------------------------------------------------------------------------
def _make_attn_kernel(num_heads, head_dim, scaling, has_mask, has_dist):
    scaling = float(scaling)
    neg_fill = float(-10000.0 * scaling)  # masked_fill happens BEFORE scaling in torch

    def kernel(*refs):
        q_ref, k_ref, v_ref = refs[0], refs[1], refs[2]
        idx = 3
        m_ref = d_ref = None
        if has_mask:
            m_ref = refs[idx]
            idx += 1
        if has_dist:
            d_ref = refs[idx]
            idx += 1
        ctx_ref, probs_ref = refs[idx], refs[idx + 1]

        if has_mask:
            mask_row = m_ref[0] != 0.0           # (1, S) bool, broadcasts over query rows

        for h in range(num_heads):               # static unroll over heads
            # fold softmax scaling into the small (Tq, Dh) q tile, not the (Tq, S) scores
            q_h = (q_ref[0, h].astype(jnp.float32) * jnp.float32(scaling)).astype(jnp.bfloat16)
            k_h = k_ref[0, h]                    # (S, Dh) bf16 — no per-tile recast
            v_h = v_ref[0, h]                    # (S, Dh) bf16

            # scores[q, k] = sum_d q[q,d]*k[k,d] — K "transpose" folded into MXU contraction
            scores = lax.dot_general(
                q_h, k_h, (((1,), (1,)), ((), ())),
                preferred_element_type=jnp.float32)           # (Tq, S) f32

            if has_mask:
                scores = jnp.where(mask_row, jnp.float32(neg_fill), scores)

            scores = scores - jnp.max(scores, axis=-1, keepdims=True)
            e = jnp.exp(scores)                                # f32 softmax math (EUP)
            denom = jnp.sum(e, axis=-1, keepdims=True)
            probs = e * (jnp.float32(1.0) / denom)             # exact row normalization

            if has_dist:
                probs = (probs + d_ref[0, h].astype(jnp.float32)) * jnp.float32(0.5)

            # dropout(p=0.0) is identity; attn_probs kept f32 for module-output parity.
            probs_ref[0, h] = probs.astype(probs_ref.dtype)

            ctx = jnp.dot(probs.astype(jnp.bfloat16), v_h,
                          preferred_element_type=jnp.float32)  # (Tq, Dh)
            # direct per-head store into the lane-dense (Tq, E) context slab —
            # this IS torch's context.transpose(1,2).contiguous().view(B, S, E) layout.
            ctx_ref[0, :, h * head_dim:(h + 1) * head_dim] = ctx.astype(ctx_ref.dtype)

    return kernel


def attention(q, k, v, scaling, mask=None, dist_map=None, *, q_tile=None):
    B, H, S, Dh = q.shape
    E = H * Dh
    Tq = min(S, q_tile or DEFAULT_Q_TILE)
    n_qt = pl.cdiv(S, Tq)
    has_mask = mask is not None
    has_dist = dist_map is not None

    in_arrays = [q, k, v]
    # TODO(synk): on 64 MiB-VMEM chips the K/V specs (block index changes only per batch)
    # could additionally use pipeline_mode=pl.Buffered(1) to halve their buffered footprint.
    in_specs = [
        pl.BlockSpec((1, H, Tq, Dh), lambda bi, t: (bi, 0, t, 0)),
        pl.BlockSpec((1, H, S, Dh), lambda bi, t: (bi, 0, 0, 0)),   # full K per batch
        pl.BlockSpec((1, H, S, Dh), lambda bi, t: (bi, 0, 0, 0)),   # full V per batch
    ]
    if has_mask:
        in_arrays.append(mask.astype(jnp.float32).reshape(B, 1, S))
        in_specs.append(pl.BlockSpec((1, 1, S), lambda bi, t: (bi, 0, 0)))
    if has_dist:
        in_arrays.append(dist_map.astype(jnp.bfloat16))   # halves the per-tile DMA traffic
        in_specs.append(pl.BlockSpec((1, H, Tq, S), lambda bi, t: (bi, 0, t, 0)))

    ctx, probs = pl.pallas_call(
        _make_attn_kernel(H, Dh, scaling, has_mask, has_dist),
        out_shape=(
            jax.ShapeDtypeStruct((B, S, E), jnp.bfloat16),     # context, already (B, S, E)
            jax.ShapeDtypeStruct((B, H, S, S), jnp.float32),   # attn_probs (module output)
        ),
        grid=(B, n_qt),   # batch leading & parallel -> megacore splits batches first
        in_specs=in_specs,
        out_specs=(
            pl.BlockSpec((1, Tq, E), lambda bi, t: (bi, t, 0)),
            pl.BlockSpec((1, H, Tq, S), lambda bi, t: (bi, 0, t, 0)),
        ),
        compiler_params=pltpu.CompilerParams(
            dimension_semantics=("parallel", "parallel"),
            vmem_limit_bytes=VMEM_LIMIT_BYTES,
        ),
    )(*in_arrays)
    return ctx, probs


# ---------------------------------------------------------------------------
# Full forward (Pallas hot path + free reshapes in the wrapper)
# ---------------------------------------------------------------------------
def prepare_params(params):
    """One-time prep: concat q/k/v weights and cast matmul weights to bf16 (hoisted)."""
    p = dict(params)
    p["w_qkv"] = jnp.concatenate(
        [params["wq"], params["wk"], params["wv"]], axis=1).astype(jnp.bfloat16)
    p["b_qkv"] = jnp.concatenate(
        [params["bq"], params["bk"], params["bv"]], axis=0).astype(jnp.float32).reshape(1, -1)
    p["wo_bf16"] = params["wo"].astype(jnp.bfloat16)
    p["bo_2d"] = params["bo"].astype(jnp.float32).reshape(1, -1)
    return p


def self_attention_forward(params, x, dist_map=None, mask=None):
    B, S, _ = x.shape
    H = params["num_heads"]
    E = params["embed_dim"]
    Dh = E // H
    scaling = Dh ** (-0.5)

    # Fused q/k/v projection: one pass over x, one (Cin, 3E) matmul,
    # three contiguous bf16 (B, S, E) outputs (no strided lane-slice copies in HBM).
    q, k, v = qkv_projection(x, params["w_qkv"], params["b_qkv"], E)

    # torch's `.view(B, num_heads, S, head_dim)` on the (B,S,E) projection: a free
    # row-major reinterpretation of contiguous memory.
    q = q.reshape(B, H, S, Dh)
    k = k.reshape(B, H, S, Dh)
    v = v.reshape(B, H, S, Dh)

    ctx, attn_probs = attention(q, k, v, scaling, mask=mask, dist_map=dist_map)
    # ctx already equals torch's context.transpose(1,2).contiguous().view(B, S, E)
    out = linear(ctx, params["wo_bf16"], params["bo_2d"], out_dtype=jnp.float32)
    return out, attn_probs


# ---------------------------------------------------------------------------
# Pure-JAX reference for verification (f32, HIGHEST precision)
# ---------------------------------------------------------------------------
def reference_forward(params, x, dist_map=None, mask=None):
    B, S, _ = x.shape
    H = params["num_heads"]
    E = params["embed_dim"]
    Dh = E // H
    scaling = Dh ** (-0.5)

    qp = x @ params["wq"] + params["bq"]
    kp = x @ params["wk"] + params["bk"]
    vp = x @ params["wv"] + params["bv"]
    q = qp.reshape(B, H, S, Dh)
    k = kp.reshape(B, H, S, Dh)
    v = vp.reshape(B, H, S, Dh)

    scores = jnp.einsum("bhqd,bhkd->bhqk", q, k, precision=lax.Precision.HIGHEST)
    if mask is not None:
        scores = jnp.where(mask.astype(bool)[:, None, None, :], -10000.0, scores)
    probs = jax.nn.softmax(scores * scaling, axis=-1)
    if dist_map is not None:
        probs = (probs + dist_map) / 2.0
    ctx = jnp.einsum("bhal,bhlv->bhav", probs, v, precision=lax.Precision.HIGHEST)
    ctx = jnp.transpose(ctx, (0, 2, 1, 3)).reshape(B, S, E)
    out = ctx @ params["wo"] + params["bo"]
    return out, probs


# ---------------------------------------------------------------------------
# Deterministic parameter init (shapes from SelfAttention.__init__)
# ---------------------------------------------------------------------------
def init_params(key, in_channels, embed_dim, num_heads):
    ks = jax.random.split(key, 10)

    def lin(kw, kb, fan_in, fan_out):
        bound = 1.0 / (fan_in ** 0.5)
        w = jax.random.uniform(kw, (fan_in, fan_out), jnp.float32, -bound, bound)
        b = jax.random.uniform(kb, (fan_out,), jnp.float32, -bound, bound)
        return w, b

    wq, bq = lin(ks[0], ks[1], in_channels, embed_dim)
    wk, bk = lin(ks[2], ks[3], in_channels, embed_dim)
    wv, bv = lin(ks[4], ks[5], in_channels, embed_dim)
    wo, bo = lin(ks[6], ks[7], embed_dim, embed_dim)
    # TODO(synk): Conv2d(5, num_heads, 1, bias=False) exists in the torch module but is
    # never used in forward; kept only for parameter parity.
    conv_w = jax.random.normal(ks[8], (num_heads, 5, 1, 1), jnp.float32) * 0.1
    return {
        "wq": wq, "bq": bq, "wk": wk, "bk": bk, "wv": wv, "bv": bv,
        "wo": wo, "bo": bo, "conv_w": conv_w,
        "num_heads": num_heads, "embed_dim": embed_dim,
    }


if __name__ == "__main__":
    B, S = 2, 8
    in_channels, embed_dim, num_heads = 16, 32, 4

    key = jax.random.PRNGKey(0)
    kp_key, kx, km, kd = jax.random.split(key, 4)
    params = init_params(kp_key, in_channels, embed_dim, num_heads)
    prepped = prepare_params(params)
    x = jax.random.normal(kx, (B, S, in_channels), jnp.float32)

    # bf16 MXU inputs / bf16 intermediates (f32 accumulate & softmax) vs f32 HIGHEST ref.
    ATOL = RTOL = 3e-2

    # --- path 1: no mask, no dist_map ---------------------------------------
    out, attn_probs = self_attention_forward(prepped, x)
    jax.block_until_ready(out)
    jax.block_until_ready(attn_probs)
    ref_out, ref_probs = reference_forward(params, x)
    assert out.shape == (B, S, embed_dim)
    assert attn_probs.shape == (B, num_heads, S, S)
    assert jnp.allclose(out, ref_out, atol=ATOL, rtol=RTOL), "output mismatch (plain)"
    assert jnp.allclose(attn_probs, ref_probs, atol=ATOL, rtol=RTOL), "probs mismatch (plain)"

    # --- path 2: with mask and dist_map --------------------------------------
    mask = (jax.random.uniform(km, (B, S)) < 0.3).astype(jnp.float32)
    dist_map = jax.random.uniform(kd, (B, num_heads, S, S), jnp.float32)
    out2, probs2 = self_attention_forward(prepped, x, dist_map=dist_map, mask=mask)
    jax.block_until_ready(out2)
    jax.block_until_ready(probs2)
    ref_out2, ref_probs2 = reference_forward(params, x, dist_map=dist_map, mask=mask)
    assert jnp.allclose(out2, ref_out2, atol=ATOL, rtol=RTOL), "output mismatch (mask+dist)"
    assert jnp.allclose(probs2, ref_probs2, atol=ATOL, rtol=RTOL), "probs mismatch (mask+dist)"

    print("KERNEL_OK")
</pallas_src>

<mosaic_0001>
module attributes {stable_mosaic.version = 11 : i64} {
  func.func @_qkv_kernel(%arg0: i32, %arg1: i32, %arg2: memref<1x8x16xf32, #tpu.memory_space<vmem>>, %arg3: memref<16x96xbf16, #tpu.memory_space<vmem>>, %arg4: memref<1x96xf32, #tpu.memory_space<vmem>>, %arg5: memref<1x8x32xbf16, #tpu.memory_space<vmem>>, %arg6: memref<1x8x32xbf16, #tpu.memory_space<vmem>>, %arg7: memref<1x8x32xbf16, #tpu.memory_space<vmem>>) attributes {dimension_semantics = [#tpu.dimension_semantics<parallel>, #tpu.dimension_semantics<parallel>], iteration_bounds = array<i64: 2, 1>, scalar_prefetch = 0 : i64, scratch_operands = 0 : i64, tpu.core_type = #tpu.core_type<tc>, window_params = [{transform_indices = @transform_0, window_bounds = array<i64: 1, 8, 16>}, {pipeline_mode = #tpu.pipeline_mode<synchronous>, transform_indices = @transform_1, window_bounds = array<i64: 16, 96>}, {pipeline_mode = #tpu.pipeline_mode<synchronous>, transform_indices = @transform_2, window_bounds = array<i64: 1, 96>}, {transform_indices = @transform_3, window_bounds = array<i64: 1, 8, 32>}, {transform_indices = @transform_4, window_bounds = array<i64: 1, 8, 32>}, {transform_indices = @transform_5, window_bounds = array<i64: 1, 8, 32>}]} {
    %c0 = arith.constant 0 : index
    %c0_0 = arith.constant 0 : index
    %c0_1 = arith.constant 0 : index
    %0 = vector.load %arg2[%c0, %c0_0, %c0_1] : memref<1x8x16xf32, #tpu.memory_space<vmem>>, vector<1x8x16xf32>
    %1 = vector.shape_cast %0 : vector<1x8x16xf32> to vector<8x16xf32>
    %2 = arith.truncf %1 : vector<8x16xf32> to vector<8x16xbf16>
    %c0_2 = arith.constant 0 : index
    %c0_3 = arith.constant 0 : index
    %3 = vector.load %arg3[%c0_2, %c0_3] : memref<16x96xbf16, #tpu.memory_space<vmem>>, vector<16x96xbf16>
    %cst = arith.constant dense<0.000000e+00> : vector<8x96xf32>
    %4 = tpu.matmul %2, %3, %cst {dimension_numbers = #tpu.dot_dimension_numbers<[1], [0], [0], [1], [0, 0, 1, 1], [], []>} : vector<8x16xbf16>, vector<16x96xbf16>, vector<8x96xf32> -> vector<8x96xf32>
    %c0_4 = arith.constant 0 : index
    %c0_5 = arith.constant 0 : index
    %5 = vector.load %arg4[%c0_4, %c0_5] : memref<1x96xf32, #tpu.memory_space<vmem>>, vector<1x96xf32>
    %6 = vector.broadcast %5 : vector<1x96xf32> to vector<8x96xf32>
    %7 = arith.addf %4, %6 : vector<8x96xf32>
    %8 = vector.extract_strided_slice %7 {offsets = [0, 0], sizes = [8, 32], strides = [1, 1]} : vector<8x96xf32> to vector<8x32xf32>
    %9 = arith.truncf %8 : vector<8x32xf32> to vector<8x32xbf16>
    %c0_6 = arith.constant 0 : index
    %c0_7 = arith.constant 0 : index
    %c0_8 = arith.constant 0 : index
    %10 = vector.load %arg5[%c0_6, %c0_7, %c0_8] : memref<1x8x32xbf16, #tpu.memory_space<vmem>>, vector<1x8x32xbf16>
    %11 = vector.shape_cast %10 : vector<1x8x32xbf16> to vector<8x32xbf16>
    %12 = vector.shape_cast %9 : vector<8x32xbf16> to vector<1x8x32xbf16>
    tpu.vector_store %arg5[%c0_6, %c0_7, %c0_8], %12 {strides = array<i32>} : memref<1x8x32xbf16, #tpu.memory_space<vmem>>, vector<1x8x32xbf16>,
    %13 = vector.extract_strided_slice %7 {offsets = [0, 32], sizes = [8, 32], strides = [1, 1]} : vector<8x96xf32> to vector<8x32xf32>
    %14 = arith.truncf %13 : vector<8x32xf32> to vector<8x32xbf16>
    %c0_9 = arith.constant 0 : index
    %c0_10 = arith.constant 0 : index
    %c0_11 = arith.constant 0 : index
    %15 = vector.load %arg6[%c0_9, %c0_10, %c0_11] : memref<1x8x32xbf16, #tpu.memory_space<vmem>>, vector<1x8x32xbf16>
    %16 = vector.shape_cast %15 : vector<1x8x32xbf16> to vector<8x32xbf16>
    %17 = vector.shape_cast %14 : vector<8x32xbf16> to vector<1x8x32xbf16>
    tpu.vector_store %arg6[%c0_9, %c0_10, %c0_11], %17 {strides = array<i32>} : memref<1x8x32xbf16, #tpu.memory_space<vmem>>, vector<1x8x32xbf16>,
    %18 = vector.extract_strided_slice %7 {offsets = [0, 64], sizes = [8, 32], strides = [1, 1]} : vector<8x96xf32> to vector<8x32xf32>
    %19 = arith.truncf %18 : vector<8x32xf32> to vector<8x32xbf16>
    %c0_12 = arith.constant 0 : index
    %c0_13 = arith.constant 0 : index
    %c0_14 = arith.constant 0 : index
    %20 = vector.load %arg7[%c0_12, %c0_13, %c0_14] : memref<1x8x32xbf16, #tpu.memory_space<vmem>>, vector<1x8x32xbf16>
    %21 = vector.shape_cast %20 : vector<1x8x32xbf16> to vector<8x32xbf16>
    %22 = vector.shape_cast %19 : vector<8x32xbf16> to vector<1x8x32xbf16>
    tpu.vector_store %arg7[%c0_12, %c0_13, %c0_14], %22 {strides = array<i32>} : memref<1x8x32xbf16, #tpu.memory_space<vmem>>, vector<1x8x32xbf16>,
    return
  }
  func.func @transform_0(%arg0: i32, %arg1: i32) -> (i32, i32, i32) {
    %c0_i32 = arith.constant 0 : i32
    %c0_i32_0 = arith.constant 0 : i32
    return %arg0, %arg1, %c0_i32 : i32, i32, i32
  }
  func.func @transform_1(%arg0: i32, %arg1: i32) -> (i32, i32) {
    %c0_i32 = arith.constant 0 : i32
    %c0_i32_0 = arith.constant 0 : i32
    %c0_i32_1 = arith.constant 0 : i32
    return %c0_i32, %c0_i32_0 : i32, i32
  }
  func.func @transform_2(%arg0: i32, %arg1: i32) -> (i32, i32) {
    %c0_i32 = arith.constant 0 : i32
    %c0_i32_0 = arith.constant 0 : i32
    %c0_i32_1 = arith.constant 0 : i32
    return %c0_i32, %c0_i32_0 : i32, i32
  }
  func.func @transform_3(%arg0: i32, %arg1: i32) -> (i32, i32, i32) {
    %c0_i32 = arith.constant 0 : i32
    %c0_i32_0 = arith.constant 0 : i32
    return %arg0, %arg1, %c0_i32 : i32, i32, i32
  }
  func.func @transform_4(%arg0: i32, %arg1: i32) -> (i32, i32, i32) {
    %c0_i32 = arith.constant 0 : i32
    %c0_i32_0 = arith.constant 0 : i32
    return %arg0, %arg1, %c0_i32 : i32, i32, i32
  }
  func.func @transform_5(%arg0: i32, %arg1: i32) -> (i32, i32, i32) {
    %c0_i32 = arith.constant 0 : i32
    %c0_i32_0 = arith.constant 0 : i32
    return %arg0, %arg1, %c0_i32 : i32, i32, i32
  }
}

</mosaic_0001>

<llo_original>
// kernel: tpu_custom_call.1
$region0: #{tpu_custom_call.1}
  #allocation0 [shape = 'u32[]', space=smem, size = 0x4, offset = 0x4, fixed_abs, tag = 'smem constant byte address 0x4 - core index']
  #allocation1 [shape = 'u32[72,128]{1,0:T(1,128)}', space=vmem, size = 0x9000, scoped, tag = 'internal scratch']
  %s0 = inlined_call_operand.hbm [shape: f32[2,8,16], index: 0, kind: input, shape index: {}]
  %s1 = inlined_call_operand.hbm [shape: bf16[16,96], index: 1, kind: input, shape index: {}]
  %s2 = inlined_call_operand.vmem [shape: f32[1,96], index: 2, kind: input, shape index: {}]
  %s3 = inlined_call_operand.hbm [shape: bf16[2,8,32], index: 3, kind: output, shape index: {0}]
  %s4 = inlined_call_operand.hbm [shape: bf16[2,8,32], index: 4, kind: output, shape index: {1}]
  %s5 = inlined_call_operand.hbm [shape: bf16[2,8,32], index: 5, kind: output, shape index: {2}]
  %6 = xla_tuple %s3, %s4, %s5
  %s7 = sld [smem:[#allocation0]]
  $region69: #{tpu_custom_call.1} parent=0
    _
  %s9 = ssub.s32 1, %s7
  %s10 = scalar_select 0, %s9, %s7
  $region1: #{tpu_custom_call.1} parent=0
    #allocation2 [shape = 'u8[8192]{0}', space=vmem, size = 0x2000, scoped, tag = 'input window, operand 0']
    #allocation3 [shape = 's32[2]{0}', space=sflag, size = 0x8, scoped, tag = 'scoped memory for tpu_custom_call.1']
    #allocation4 [shape = 's32[2]{0}', space=sflag, size = 0x8, scoped, tag = 'scoped memory for tpu_custom_call.1']
    #allocation5 [shape = 'u8[4096]{0}', space=vmem, size = 0x1000, scoped, tag = 'input window, operand 1, single buffered']
    #allocation6 [shape = 's32[1]{0}', space=sflag, size = 0x4, scoped, tag = 'scoped memory for tpu_custom_call.1']
    #allocation7 [shape = 'u8[4096]{0}', space=vmem, size = 0x1000, scoped, tag = 'output window, operand 0']
    #allocation8 [shape = 'u8[4096]{0}', space=vmem, size = 0x1000, scoped, tag = 'output window, operand 1']
    #allocation9 [shape = 's32[2]{0}', space=sflag, size = 0x8, scoped, tag = 'scoped memory for tpu_custom_call.1']
    #allocation10 [shape = 'u8[4096]{0}', space=vmem, size = 0x1000, scoped, tag = 'output window, operand 2']
    %11 = vsyncpa [#allocation3], 0
    %s12 = scalar_lea.sflag [#allocation3], 1
    %13 = vsyncpa %s12, 0
    %14 = vsyncpa [#allocation6], 0
    %15 = vsyncpa [#allocation4], 0
    %s16 = scalar_lea.sflag [#allocation4], 1
    %17 = vsyncpa %s16, 0
    %18 = vsyncpa [#allocation9], 0
    %s19 = scalar_lea.sflag [#allocation9], 1
    %20 = vsyncpa %s19, 0
    loop: start=0, step=1, limit=4
    $region2: #{tpu_custom_call.1} parent=1 // loop_pre_header
      _
    $region3: #{tpu_custom_call.1} parent=1 // loop_header
      %s22 = sphi 0, %s26
      %p23 = scmp.ge.s32.totalorder %s22, 4
      %s29 = sphi 0, %s41
      %s30 = sphi 0, %s37
      %s31 = sphi 0, %s29
      %s32 = sphi 0, %s30
      %s33 = sphi 0, %s31
      %s34 = sphi 0, %s32
      %s46 = sphi 0, %s48
      %s49 = sphi 0, %s46
      %s50 = sphi 0, %s49
      %s66 = sphi 0, %s50
      %s70 = sphi 0, %s70
      %s72 = sphi 0, %s70
      %s73 = sphi 0, %s72
      %s87 = sphi 0, %s73
      %s91 = sphi 0, %s91
      %s93 = sphi 0, %s91
      %s94 = sphi 0, %s93
      %s108 = sphi 0, %s94
      %s116 = sphi 0, %s118
      %s119 = sphi 0, %s116
      %s120 = sphi 0, %s119
      %s136 = sphi 0, %s120
      %s144 = sphi 0, %s146
      %s147 = sphi 0, %s144
      %s148 = sphi 0, %s147
      %s164 = sphi 0, %s148
      %s172 = sphi 0, %s174
      %s175 = sphi 0, %s172
      %s176 = sphi 0, %s175
      %s192 = sphi 0, %s176
    $region4: #{tpu_custom_call.1} parent=1 // loop_header_branch
      %25 = sbr.rel (%p23) target = $region8
    $region5: #{tpu_custom_call.1} parent=1 // loop_body
      %s27 = ssub.s32 %s22, 1
      %s28 = ssub.s32 %s22, 2
      %s35 = sadd.s32 1, %s30
      %p36 = scmp.ge.s32.totalorder %s35, 1
      %s37 = scalar_select %p36, 0, %s35
      %s38 = sadd.s32 1, %s29
      %s39 = scalar_select %p36, %s38, %s29
      %p40 = scmp.ge.s32.totalorder %s39, 2
      %s41 = scalar_select %p40, 0, %s39
      %s42 = ssub.s32 %s29, %s41
      %s43 = ssub.s32 %s30, %s37
      %s44 = sor.u32 %s42, %s43
      %p45 = scmp.eq.s32.totalorder %s44, 0
      %s47 = sadd.s32 %s46, 1
      %s48 = scalar_select %p45, %s46, %s47
      %p51 = pneg %p45
      %p52 = scmp.eq.s32.totalorder %s22, 1
      %p53 = por %p51, %p52
      %p54 = scmp.ne.s32.totalorder %s46, %s49
      %p55 = scmp.eq.s32.totalorder %s22, 0
      %p56 = por %p54, %p55
      %p57 = scmp.ne.s32.totalorder %s46, %s49
      %p58 = scmp.eq.s32.totalorder %s27, 1
      %p59 = por %p57, %p58
      %p60 = scmp.ne.s32.totalorder %s49, %s50
      %p61 = scmp.eq.s32.totalorder %s27, 0
      %p62 = por %p60, %p61
      %p63 = scmp.ne.s32.totalorder %s49, %s50
      %p64 = scmp.eq.s32.totalorder %s28, 1
      %p65 = por %p63, %p64
      %p67 = scmp.ne.s32.totalorder %s50, %s66
      %p68 = scmp.eq.s32.totalorder %s28, 0
      %p69 = por %p67, %p68
      %s71 = sadd.s32 %s70, 1
      %p74 = scmp.eq.s32.totalorder %s22, 1
      %p75 = scmp.ne.s32.totalorder %s70, %s72
      %p76 = scmp.eq.s32.totalorder %s22, 0
      %p77 = por %p75, %p76
      %p78 = scmp.ne.s32.totalorder %s70, %s72
      %p79 = scmp.eq.s32.totalorder %s27, 1
      %p80 = por %p78, %p79
      %p81 = scmp.ne.s32.totalorder %s72, %s73
      %p82 = scmp.eq.s32.totalorder %s27, 0
      %p83 = por %p81, %p82
      %p84 = scmp.ne.s32.totalorder %s72, %s73
      %p85 = scmp.eq.s32.totalorder %s28, 1
      %p86 = por %p84, %p85
      %p88 = scmp.ne.s32.totalorder %s73, %s87
      %p89 = scmp.eq.s32.totalorder %s28, 0
      %p90 = por %p88, %p89
      %s92 = sadd.s32 %s91, 1
      %p95 = scmp.eq.s32.totalorder %s22, 1
      %p96 = scmp.ne.s32.totalorder %s91, %s93
      %p97 = scmp.eq.s32.totalorder %s22, 0
      %p98 = por %p96, %p97
      %p99 = scmp.ne.s32.totalorder %s91, %s93
      %p100 = scmp.eq.s32.totalorder %s27, 1
      %p101 = por %p99, %p100
      %p102 = scmp.ne.s32.totalorder %s93, %s94
      %p103 = scmp.eq.s32.totalorder %s27, 0
      %p104 = por %p102, %p103
      %p105 = scmp.ne.s32.totalorder %s93, %s94
      %p106 = scmp.eq.s32.totalorder %s28, 1
      %p107 = por %p105, %p106
      %p109 = scmp.ne.s32.totalorder %s94, %s108
      %p110 = scmp.eq.s32.totalorder %s28, 0
      %p111 = por %p109, %p110
      %s112 = ssub.s32 %s29, %s41
      %s113 = ssub.s32 %s30, %s37
      %s114 = sor.u32 %s112, %s113
      %p115 = scmp.eq.s32.totalorder %s114, 0
      %s117 = sadd.s32 %s116, 1
      %s118 = scalar_select %p115, %s116, %s117
      %p121 = pneg %p115
      %p122 = scmp.eq.s32.totalorder %s22, 1
      %p123 = por %p121, %p122
      %p124 = scmp.ne.s32.totalorder %s116, %s119
      %p125 = scmp.eq.s32.totalorder %s22, 0
      %p126 = por %p124, %p125
      %p127 = scmp.ne.s32.totalorder %s116, %s119
      %p128 = scmp.eq.s32.totalorder %s27, 1
      %p129 = por %p127, %p128
      %p130 = scmp.ne.s32.totalorder %s119, %s120
      %p131 = scmp.eq.s32.totalorder %s27, 0
      %p132 = por %p130, %p131
      %p133 = scmp.ne.s32.totalorder %s119, %s120
      %p134 = scmp.eq.s32.totalorder %s28, 1
      %p135 = por %p133, %p134
      %p137 = scmp.ne.s32.totalorder %s120, %s136
      %p138 = scmp.eq.s32.totalorder %s28, 0
      %p139 = por %p137, %p138
      %s140 = ssub.s32 %s29, %s41
      %s141 = ssub.s32 %s30, %s37
      %s142 = sor.u32 %s140, %s141
      %p143 = scmp.eq.s32.totalorder %s142, 0
      %s145 = sadd.s32 %s144, 1
      %s146 = scalar_select %p143, %s144, %s145
      %p149 = pneg %p143
      %p150 = scmp.eq.s32.totalorder %s22, 1
      %p151 = por %p149, %p150
      %p152 = scmp.ne.s32.totalorder %s144, %s147
      %p153 = scmp.eq.s32.totalorder %s22, 0
      %p154 = por %p152, %p153
      %p155 = scmp.ne.s32.totalorder %s144, %s147
      %p156 = scmp.eq.s32.totalorder %s27, 1
      %p157 = por %p155, %p156
      %p158 = scmp.ne.s32.totalorder %s147, %s148
      %p159 = scmp.eq.s32.totalorder %s27, 0
      %p160 = por %p158, %p159
      %p161 = scmp.ne.s32.totalorder %s147, %s148
      %p162 = scmp.eq.s32.totalorder %s28, 1
      %p163 = por %p161, %p162
      %p165 = scmp.ne.s32.totalorder %s148, %s164
      %p166 = scmp.eq.s32.totalorder %s28, 0
      %p167 = por %p165, %p166
      %s168 = ssub.s32 %s29, %s41
      %s169 = ssub.s32 %s30, %s37
      %s170 = sor.u32 %s168, %s169
      %p171 = scmp.eq.s32.totalorder %s170, 0
      %s173 = sadd.s32 %s172, 1
      %s174 = scalar_select %p171, %s172, %s173
      %p177 = pneg %p171
      %p178 = scmp.eq.s32.totalorder %s22, 1
      %p179 = por %p177, %p178
      %p180 = scmp.ne.s32.totalorder %s172, %s175
      %p181 = scmp.eq.s32.totalorder %s22, 0
      %p182 = por %p180, %p181
      %p183 = scmp.ne.s32.totalorder %s172, %s175
      %p184 = scmp.eq.s32.totalorder %s27, 1
      %p185 = por %p183, %p184
      %p186 = scmp.ne.s32.totalorder %s175, %s176
      %p187 = scmp.eq.s32.totalorder %s27, 0
      %p188 = por %p186, %p187
      %p189 = scmp.ne.s32.totalorder %s175, %s176
      %p190 = scmp.eq.s32.totalorder %s28, 1
      %p191 = por %p189, %p190
      %p193 = scmp.ne.s32.totalorder %s176, %s192
      %p194 = scmp.eq.s32.totalorder %s28, 0
      %p195 = por %p193, %p194
      %p196 = scmp.le.s32.totalorder 1, %s22
      %p197 = scmp.lt.s32.totalorder %s22, 3
      %p198 = pnand %p196, %p197
      %p199 = pneg %p198
      // Predicated region
      $region9: #{tpu_custom_call.1} parent=5 // pred_check
        _
      $region10: #{tpu_custom_call.1} parent=5 // pred_check_branch
        %201 = sbr.rel (%p198) target = $region12
      $region11: #{tpu_custom_call.1} parent=5 // pred_region
        %s202 = ssub.s32 %s22, 1
        // Predicated region
        $region13: #{tpu_custom_call.1} parent=11 // pred_check
          %p203 = pneg %p83
        $region14: #{tpu_custom_call.1} parent=11 // pred_check_branch
          %205 = sbr.rel (%p203) target = $region16
        $region15: #{tpu_custom_call.1} parent=11 // pred_region
          %207 = vsyncadd [#allocation6], 0
          %s208 = sshll.u32 %s1, 4
          %s209 = int_to_ptr.hbm [resolvable:$true] %s208
          %s210 = sshll.u32 [#allocation5], 4
          %s211 = int_to_ptr.vmem [resolvable:$true] %s210
          %216 = dma.hbm_to_vmem [thread:$0]  %s209, 128, %s211, [#allocation6], 64, 64, 4
        $region16: #{tpu_custom_call.1} parent=11 // pred_fallthru
          _
        // Predicated region
        $region17: #{tpu_custom_call.1} parent=11 // pred_check
          %p217 = pneg %p104
        $region18: #{tpu_custom_call.1} parent=11 // pred_check_branch
          %219 = sbr.rel (%p217) target = $region20
        $region19: #{tpu_custom_call.1} parent=11 // pred_region
          _
        $region20: #{tpu_custom_call.1} parent=11 // pred_fallthru
          _
      $region12: #{tpu_custom_call.1} parent=5 // pred_fallthru
        _
      %p220 = scmp.lt.s32.totalorder %s22, 2
      // Predicated region
      $region21: #{tpu_custom_call.1} parent=5 // pred_check
        %p221 = pneg %p220
      $region22: #{tpu_custom_call.1} parent=5 // pred_check_branch
        %223 = sbr.rel (%p221) target = $region24
      $region23: #{tpu_custom_call.1} parent=5 // pred_region
        // Predicated region
        $region25: #{tpu_custom_call.1} parent=23 // pred_check
          %p224 = pneg %p56
        $region26: #{tpu_custom_call.1} parent=23 // pred_check_branch
          %226 = sbr.rel (%p224) target = $region28
        $region27: #{tpu_custom_call.1} parent=23 // pred_region
          %s227 = sand.u32 %s46, 1
          %s228 = scalar_lea.sflag [#allocation3], %s227
          %s229 = sand.u32 %s46, 1
          %s230 = smul.addr %s229, 8
          %s231 = scalar_lea.vmem [#allocation2], %s230
          %233 = vsyncadd %s228, 0
          %s234 = sadd.s32 %s30, %s29
          %s235 = smul.addr %s234, 8
          %s236 = scalar_lea.hbm %s0, %s235
          %s238 = sshll.u32 %s236, 4
          %s239 = int_to_ptr.hbm [resolvable:$true] %s238
          %s240 = sshll.u32 %s231, 4
          %s241 = int_to_ptr.vmem [resolvable:$true] %s240
          %243 = dma.hbm_to_vmem [thread:$0]  %s239, 128, %s241, %s228
        $region28: #{tpu_custom_call.1} parent=23 // pred_fallthru
          _
      $region24: #{tpu_custom_call.1} parent=5 // pred_fallthru
        _
      %p244 = scmp.le.s32.totalorder 1, %s22
      %p245 = scmp.lt.s32.totalorder %s22, 3
      %p246 = pnand %p244, %p245
      %p247 = pneg %p246
      // Predicated region
      $region29: #{tpu_custom_call.1} parent=5 // pred_check
        _
      $region30: #{tpu_custom_call.1} parent=5 // pred_check_branch
        %249 = sbr.rel (%p246) target = $region32
      $region31: #{tpu_custom_call.1} parent=5 // pred_region
        %s250 = ssub.s32 %s22, 1
        %s251 = sand.u32 %s49, 1
        %s252 = scalar_lea.sflag [#allocation3], %s251
        %s253 = sand.u32 %s49, 1
        %s254 = smul.addr %s253, 8
        %s255 = scalar_lea.vmem [#allocation2], %s254
        // Predicated region
        $region33: #{tpu_custom_call.1} parent=31 // pred_check
          %p256 = pneg %p62
        $region34: #{tpu_custom_call.1} parent=31 // pred_check_branch
          %258 = sbr.rel (%p256) target = $region36
        $region35: #{tpu_custom_call.1} parent=31 // pred_region
          %260 = dma.done %s252, 128
        $region36: #{tpu_custom_call.1} parent=31 // pred_fallthru
          _
        // Predicated region
        $region37: #{tpu_custom_call.1} parent=31 // pred_check
          %p261 = pneg %p83
        $region38: #{tpu_custom_call.1} parent=31 // pred_check_branch
          %263 = sbr.rel (%p261) target = $region40
        $region39: #{tpu_custom_call.1} parent=31 // pred_region
          %265 = dma.done [#allocation6], 128
        $region40: #{tpu_custom_call.1} parent=31 // pred_fallthru
          _
        %s266 = sand.u32 %s49, 1
        %s267 = scalar_lea.sflag [#allocation3], %s266
        %s268 = sand.u32 %s49, 1
        %s269 = smul.addr %s268, 8
        %s270 = scalar_lea.vmem [#allocation2], %s269
        %p271 = pneg %p62
        %p272 = pneg %p59
        %p273 = pneg %p83
        %p274 = pneg %p80
        %p275 = pneg %p104
        %p276 = pneg %p101
        %p277 = pneg %p132
        %p278 = pneg %p129
        %s279 = sand.u32 %s119, 1
        %s280 = scalar_lea.sflag [#allocation4], %s279
        %s281 = sand.u32 %s119, 1
        %s282 = smul.addr %s281, 4
        %s283 = scalar_lea.vmem [#allocation7], %s282
        %p284 = pneg %p160
        %p285 = pneg %p157
        %s286 = sand.u32 %s27, 1
        %s287 = scalar_lea.sflag [#allocation9], %s286
        %s288 = sand.u32 %s147, 1
        %s289 = smul.addr %s288, 4
        %s290 = scalar_lea.vmem [#allocation8], %s289
        %p291 = pneg %p188
        %p292 = pneg %p185
        %s293 = sand.u32 %s27, 1
        %s294 = scalar_lea.sflag [#allocation9], %s293
        %s295 = sand.u32 %s175, 1
        %s296 = smul.addr %s295, 4
        %s297 = scalar_lea.vmem [#allocation10], %s296
        %v299 = vld [vmem:[%s255] sm:$0xff]
        %v300 = vpack.c.bf16 %v299, %v299
        %v301 = vld [vmem:[#allocation5] sm:$0xf]
        %v302 = vld [vmem:[#allocation5 + $0x4] sm:$0xf]
        %v303 = vld [vmem:[%s2] sm:$0x1]
        %v305 = vperm.slane %v303, 0
        %v309 = vunpack.c.l.b16 %v301
        %v310 = vunpack.c.l.b16 %v302
        %v311 = vpack.c.b16 %v310, %v309
        %vm313 = vcmask 130048
        %v315 = vsel %vm313, %v300, 0
        %317 = vmatpush.bf16.msra.mxu0 0
        %318 = vmatpush.bf16.msra.mxu0 0
        %319 = vmatpush.bf16.msra.mxu0 0
        %320 = vmatpush.bf16.msra.mxu0 0
        %321 = vmatpush.bf16.msra.mxu0 0
        %322 = vmatpush.bf16.msra.mxu0 0
        %323 = vmatpush.bf16.msra.mxu0 0
        %324 = vmatpush.bf16.msra.mxu0 %v311
        %325 = vmatmul.bf16.gmra.mxu0 %v315
        %v326 = vpop.f32.mrf.mxu0
        %v327 = vadd.f32 %v305, %v326
        %v328 = vpop.f32.mrf.mxu0
        %329 = vdwg.mxu0
        %v330 = vpack.c.bf16 %v327, %v327
        %vm331 = vcmask 257024
        %332 = vst.msk [vmem:[%s283] sm:$0xf] %vm331, %v330
        %334 = vrot.lane.b32.xlu0 %v330, 96
        %v335 = vpop.permute.xlu0 %334
        %337 = vst.msk [vmem:[%s290] sm:$0xf] %vm331, %v335
        %338 = vrot.lane.b32.xlu0 %v330, 64
        %v339 = vpop.permute.xlu0 %338
        %341 = vst.msk [vmem:[%s297] sm:$0xf] %vm331, %v339
        %s342 = sand.u32 %s119, 1
        %s343 = scalar_lea.sflag [#allocation4], %s342
        %s344 = sand.u32 %s119, 1
        %s345 = smul.addr %s344, 4
        %s346 = scalar_lea.vmem [#allocation7], %s345
        %s347 = sand.u32 %s27, 1
        %s348 = scalar_lea.sflag [#allocation9], %s347
        %s349 = sand.u32 %s147, 1
        %s350 = smul.addr %s349, 4
        %s351 = scalar_lea.vmem [#allocation8], %s350
        %s352 = sand.u32 %s27, 1
        %s353 = scalar_lea.sflag [#allocation9], %s352
        %s354 = sand.u32 %s175, 1
        %s355 = smul.addr %s354, 4
        %s356 = scalar_lea.vmem [#allocation10], %s355
        // Predicated region
        $region41: #{tpu_custom_call.1} parent=31 // pred_check
          %p357 = pneg %p129
        $region42: #{tpu_custom_call.1} parent=31 // pred_check_branch
          %359 = sbr.rel (%p357) target = $region44
        $region43: #{tpu_custom_call.1} parent=31 // pred_region
          %361 = vsyncadd %s343, 0
          %s362 = sadd.s32 %s32, %s31
          %s363 = smul.addr %s362, 4
          %s364 = scalar_lea.hbm %s3, %s363
          %s366 = sshll.u32 %s346, 4
          %s367 = int_to_ptr.vmem [resolvable:$true] %s366
          %s368 = sshll.u32 %s364, 4
          %s369 = int_to_ptr.hbm [resolvable:$true] %s368
          %371 = dma.vmem_to_hbm [thread:$0]  %s367, 64, %s369, %s343
        $region44: #{tpu_custom_call.1} parent=31 // pred_fallthru
          _
        // Predicated region
        $region45: #{tpu_custom_call.1} parent=31 // pred_check
          %p372 = pneg %p157
        $region46: #{tpu_custom_call.1} parent=31 // pred_check_branch
          %374 = sbr.rel (%p372) target = $region48
        $region47: #{tpu_custom_call.1} parent=31 // pred_region
          %376 = vsyncadd %s348, 0
          %s377 = sadd.s32 %s32, %s31
          %s378 = smul.addr %s377, 4
          %s379 = scalar_lea.hbm %s4, %s378
          %s381 = sshll.u32 %s351, 4
          %s382 = int_to_ptr.vmem [resolvable:$true] %s381
          %s383 = sshll.u32 %s379, 4
          %s384 = int_to_ptr.hbm [resolvable:$true] %s383
          %386 = dma.vmem_to_hbm [thread:$0]  %s382, 64, %s384, %s348
        $region48: #{tpu_custom_call.1} parent=31 // pred_fallthru
          _
        // Predicated region
        $region49: #{tpu_custom_call.1} parent=31 // pred_check
          %p387 = pneg %p185
        $region50: #{tpu_custom_call.1} parent=31 // pred_check_branch
          %389 = sbr.rel (%p387) target = $region52
        $region51: #{tpu_custom_call.1} parent=31 // pred_region
          %391 = vsyncadd %s353, 0
          %s392 = sadd.s32 %s32, %s31
          %s393 = smul.addr %s392, 4
          %s394 = scalar_lea.hbm %s5, %s393
          %s396 = sshll.u32 %s356, 4
          %s397 = int_to_ptr.vmem [resolvable:$true] %s396
          %s398 = sshll.u32 %s394, 4
          %s399 = int_to_ptr.hbm [resolvable:$true] %s398
          %401 = dma.vmem_to_hbm [thread:$0]  %s397, 64, %s399, %s353
        $region52: #{tpu_custom_call.1} parent=31 // pred_fallthru
          _
      $region32: #{tpu_custom_call.1} parent=5 // pred_fallthru
        _
      %p402 = scmp.le.s32.totalorder 2, %s22
      // Predicated region
      $region53: #{tpu_custom_call.1} parent=5 // pred_check
        %p403 = pneg %p402
      $region54: #{tpu_custom_call.1} parent=5 // pred_check_branch
        %405 = sbr.rel (%p403) target = $region56
      $region55: #{tpu_custom_call.1} parent=5 // pred_region
        %s406 = ssub.s32 %s22, 2
        // Predicated region
        $region57: #{tpu_custom_call.1} parent=55 // pred_check
          %p407 = pneg %p135
        $region58: #{tpu_custom_call.1} parent=55 // pred_check_branch
          %409 = sbr.rel (%p407) target = $region60
        $region59: #{tpu_custom_call.1} parent=55 // pred_region
          %s410 = sand.u32 %s120, 1
          %s411 = scalar_lea.sflag [#allocation4], %s410
          %s412 = sand.u32 %s120, 1
          %s413 = smul.addr %s412, 4
          %s414 = scalar_lea.vmem [#allocation7], %s413
          %416 = dma.done %s411, 64
        $region60: #{tpu_custom_call.1} parent=55 // pred_fallthru
          _
        // Predicated region
        $region61: #{tpu_custom_call.1} parent=55 // pred_check
          %p417 = pneg %p163
        $region62: #{tpu_custom_call.1} parent=55 // pred_check_branch
          %419 = sbr.rel (%p417) target = $region64
        $region63: #{tpu_custom_call.1} parent=55 // pred_region
          %s420 = sand.u32 %s28, 1
          %s421 = scalar_lea.sflag [#allocation9], %s420
          %s422 = sand.u32 %s148, 1
          %s423 = smul.addr %s422, 4
          %s424 = scalar_lea.vmem [#allocation8], %s423
          %426 = dma.done %s421, 64
        $region64: #{tpu_custom_call.1} parent=55 // pred_fallthru
          _
        // Predicated region
        $region65: #{tpu_custom_call.1} parent=55 // pred_check
          %p427 = pneg %p191
        $region66: #{tpu_custom_call.1} parent=55 // pred_check_branch
          %429 = sbr.rel (%p427) target = $region68
        $region67: #{tpu_custom_call.1} parent=55 // pred_region
          %s430 = sand.u32 %s28, 1
          %s431 = scalar_lea.sflag [#allocation9], %s430
          %s432 = sand.u32 %s176, 1
          %s433 = smul.addr %s432, 4
          %s434 = scalar_lea.vmem [#allocation10], %s433
          %436 = dma.done %s431, 64
        $region68: #{tpu_custom_call.1} parent=55 // pred_fallthru
          _
      $region56: #{tpu_custom_call.1} parent=5 // pred_fallthru
        _
    $region6: #{tpu_custom_call.1} parent=1 // loop_footer
      %s26 = sadd.s32 1, %s22
    $region7: #{tpu_custom_call.1} parent=1 // loop_footer_branch
      %21 = sbr.rel target = $region3
    $region8: #{tpu_custom_call.1} parent=1 // loop_exit
      _
    %437 = vsyncpa [#allocation3], 1
    %s438 = scalar_lea.sflag [#allocation3], 1
    %439 = vsyncpa %s438, 1
    %440 = vsyncpa [#allocation6], 1
    %441 = vsyncpa [#allocation4], 1
    %s442 = scalar_lea.sflag [#allocation4], 1
    %443 = vsyncpa %s442, 1
    %444 = vsyncpa [#allocation9], 1
    %s445 = scalar_lea.sflag [#allocation9], 1
    %446 = vsyncpa %s445, 1

</llo_original>
